<compile_context>
chip_gen: v7x
topology: tpu7x:2x2x1
jax: 0.10.0
libtpu: 0.0.40
codegen_flags: <defaults>
</compile_context>

<pallas_src>
import functools

import jax
import jax.numpy as jnp
from jax.experimental import pallas as pl
from jax.experimental.pallas import tpu as pltpu


def _conv_relu_kernel(x_ref, w_ref, o_ref, *, kh_size, pad):
    # x_ref: (nb, H,  W*Cin)        activations (compute dtype), unpadded
    # w_ref: (KH, W*Cin, Wo*Cout)   width-folded conv weight (compute dtype)
    # o_ref: (nb, Ho, Wo*Cout)      lane-dense output block
    nb, h, wcin = x_ref.shape
    ho = o_ref.shape[1]
    nout = o_ref.shape[2]

    # Single aligned full-block read; reshape is a leading-dim collapse only.
    xm = x_ref[...].reshape(nb * h, wcin)

    # One MXU contraction per kernel row, f32 accumulation.  H padding is
    # applied on the f32 *products* (shift-and-add of each row tap) instead of
    # materializing a zero-padded activation scratch: rows that would have
    # multiplied the zero halo are simply replaced by zero rows of the
    # contribution, so the result is exact.
    acc = jnp.zeros((nb, ho, nout), jnp.float32)
    for kh in range(kh_size):
        p = jnp.dot(xm, w_ref[kh], preferred_element_type=jnp.float32)
        p = p.reshape(nb, h, nout)
        s = kh - pad                               # input-row shift of this tap
        lo_src, hi_src = max(0, s), min(h, ho + s)  # valid input rows
        if lo_src >= hi_src:
            continue
        lo_dst, hi_dst = lo_src - s, hi_src - s     # output rows they feed
        pieces = []
        if lo_dst > 0:
            pieces.append(jnp.zeros((nb, lo_dst, nout), jnp.float32))
        pieces.append(p[:, lo_src:hi_src, :])
        if ho - hi_dst > 0:
            pieces.append(jnp.zeros((nb, ho - hi_dst, nout), jnp.float32))
        contrib = pieces[0] if len(pieces) == 1 else jnp.concatenate(pieces, axis=1)
        acc = acc + contrib

    o_ref[...] = jnp.maximum(acc, 0.0).astype(o_ref.dtype)   # ReLU, full-width store


def _expand_weight(weight_oihw, w_size, wo_size, pad):
    """(Cout,Cin,KH,KW) -> (KH, W*Cin, Wo*Cout) width-folded matmul weight.

    W2[kh, (w, ci), (wo, co)] = w[co, ci, kh, w + pad - wo] when
    0 <= w + pad - wo < KW, else 0.  The width axis indexes the UNPADDED
    input: padded-width positions only ever multiply zeros, so their rows are
    dropped (no wasted MXU rows; taps stay at lane width W*Cin).
    """
    cout, cin, kh, kw = weight_oihw.shape
    w_hwio = jnp.transpose(weight_oihw, (2, 3, 1, 0))            # (KH,KW,Cin,Cout)
    kw_idx = (jnp.arange(w_size)[:, None] + pad
              - jnp.arange(wo_size)[None, :])                    # (W, Wo)
    valid = (kw_idx >= 0) & (kw_idx < kw)
    kw_safe = jnp.clip(kw_idx, 0, kw - 1)
    w_g = w_hwio[:, kw_safe]                                     # (KH,W,Wo,Cin,Cout)
    w_g = jnp.where(valid[None, :, :, None, None], w_g, 0)
    w2 = jnp.transpose(w_g, (0, 1, 3, 2, 4))                     # (KH,W,Cin,Wo,Cout)
    return w2.reshape(kh, w_size * cin, wo_size * cout)


def _pick_batch_block(n, ho, *, target_rows=256, min_steps=4):
    """Fill the MXU rows (nb*Ho -> target_rows, the 256-row MXU on v6e/v7x)
    while keeping >= min_steps grid steps (>= 2 per v7x TensorCore) so the
    BlockSpec pipeline overlaps in/out DMA with compute."""
    divisors = [d for d in range(1, n + 1) if n % d == 0]
    for nb in divisors:
        if nb * ho >= target_rows and n // nb >= min_steps:
            return nb
    # Can't satisfy both (tiny N): keep at least 2 steps with the largest nb.
    for nb in reversed(divisors):
        if n // nb >= 2:
            return nb
    return n


def _weight_spec(block_shape, weight_bytes):
    """Constant index_map: the folded weight is DMA'd once and stays resident
    in VMEM.  Once it reaches MBs, single-buffer it (pl.Buffered(1)) to halve
    its footprint -- this matters on v7x's 64 MiB VMEM."""
    index_map = lambda n: (0, 0, 0)
    if weight_bytes >= (1 << 20):
        try:
            return pl.BlockSpec(block_shape, index_map,
                                pipeline_mode=pl.Buffered(1))
        except TypeError:   # older jax: BlockSpec has no pipeline_mode kwarg
            pass
    return pl.BlockSpec(block_shape, index_map)


def conv_relu(x_nchw, weight_oihw, *, padding=1, batch_block=None,
              compute_dtype=None):
    """ConvRelu forward.  x_nchw: (N,Cin,H,W); weight_oihw: (Cout,Cin,KH,KW).

    Matches nn.Conv2d(stride=1, padding=padding, dilation=1, groups=1,
    bias=False) followed by ReLU.  compute_dtype=jnp.bfloat16 halves the
    activation/weight DMA bytes and is recommended on v5e as well as v6e/v7x
    (the MXU takes bf16 natively everywhere; accumulation and ReLU stay f32).
    """
    N, Cin, H, W = x_nchw.shape
    Cout, Cin_w, KH, KW = weight_oihw.shape
    assert Cin == Cin_w
    Ho = H + 2 * padding - KH + 1
    Wo = W + 2 * padding - KW + 1

    out_dtype = x_nchw.dtype
    if compute_dtype is None:
        compute_dtype = x_nchw.dtype
    cbytes = jnp.dtype(compute_dtype).itemsize
    obytes = jnp.dtype(out_dtype).itemsize

    if batch_block is None:
        batch_block = _pick_batch_block(N, Ho)
    assert N % batch_block == 0
    nb = batch_block

    # NCHW -> NHWC -> (N, H, W*Cin): boundary-only layout plumbing to match
    # the PyTorch NCHW interface (disappears in an NHWC model).
    x_in = jnp.transpose(x_nchw, (0, 2, 3, 1)).reshape(N, H, W * Cin)
    x_in = x_in.astype(compute_dtype)

    # Width-folded weight over the UNPADDED width (constant-folds under jit).
    w2 = _expand_weight(weight_oihw, W, Wo, padding).astype(compute_dtype)

    kernel = functools.partial(_conv_relu_kernel, kh_size=KH, pad=padding)

    # VMEM budget from actual buffer sizes (double-buffered in/out blocks,
    # resident weight counted twice for headroom), 2x margin, capped at
    # 48 MiB so it stays inside v7x's 64 MiB physical VMEM.
    in_block = nb * H * W * Cin * cbytes
    out_block = nb * Ho * Wo * Cout * obytes
    weight_bytes = KH * W * Cin * Wo * Cout * cbytes
    need = 2 * in_block + 2 * out_block + 2 * weight_bytes
    vmem_limit = int(min(max(2 * need, 16 << 20), 48 << 20))

    # FLOPs the kernel actually executes on the MXU (K = KH*W*Cin, M = N*H).
    flops = 2 * N * H * (KH * W * Cin) * (Wo * Cout)
    bytes_accessed = (x_in.size * cbytes + w2.size * cbytes
                      + N * Ho * Wo * Cout * obytes)

    out = pl.pallas_call(
        kernel,
        out_shape=jax.ShapeDtypeStruct((N, Ho, Wo * Cout), out_dtype),
        grid_spec=pltpu.PrefetchScalarGridSpec(
            num_scalar_prefetch=0,
            grid=(N // nb,),
            in_specs=[
                pl.BlockSpec((nb, H, W * Cin), lambda n: (n, 0, 0)),
                _weight_spec((KH, W * Cin, Wo * Cout), weight_bytes),
            ],
            # TODO(synk): for non-demo shapes keep this last dim a multiple of
            # 128 by tiling Cout (and/or folding less of Wo); otherwise stores
            # fall back to masked vst.msk partial stores.
            out_specs=pl.BlockSpec((nb, Ho, Wo * Cout), lambda n: (n, 0, 0)),
        ),
        compiler_params=pltpu.CompilerParams(
            dimension_semantics=("parallel",),
            vmem_limit_bytes=vmem_limit,
        ),
        cost_estimate=pl.CostEstimate(
            flops=flops, transcendentals=0, bytes_accessed=bytes_accessed),
    )(x_in, w2)

    # (N, Ho, Wo*Cout) -> NCHW.
    return jnp.transpose(out.reshape(N, Ho, Wo, Cout), (0, 3, 1, 2))


if __name__ == "__main__":
    key = jax.random.PRNGKey(0)
    k_x, k_w = jax.random.split(key)

    # ConvRelu(in_planes=4, out_planes=8, kernel_size=3) at small shapes.
    N, Cin, H, W = 2, 4, 16, 16
    Cout, KH, KW = 8, 3, 3

    x = jax.random.normal(k_x, (N, Cin, H, W), dtype=jnp.float32)
    # Synthetic deterministic weights, PyTorch conv layout (Cout, Cin, KH, KW).
    weight = jax.random.normal(k_w, (Cout, Cin, KH, KW), dtype=jnp.float32) * 0.1

    out = jax.block_until_ready(conv_relu(x, weight, padding=1))

    # Reference: XLA conv + relu.
    ref = jax.lax.conv_general_dilated(
        x, weight, window_strides=(1, 1), padding=((1, 1), (1, 1)),
        dimension_numbers=("NCHW", "OIHW", "NCHW"))
    ref = jnp.maximum(ref, 0.0)
    assert out.shape == (N, Cout, H, W)
    assert jnp.allclose(out, ref, atol=1e-4, rtol=1e-4), "mismatch vs reference conv"

    # bf16 compute path (recommended on v5e/v6e/v7x): bf16 activations and
    # folded weight, f32 MXU accumulation + f32 ReLU.
    out_bf16 = jax.block_until_ready(
        conv_relu(x, weight, padding=1, compute_dtype=jnp.bfloat16))
    assert jnp.allclose(out_bf16, ref, atol=5e-2, rtol=5e-2), "bf16 path mismatch"

    print("KERNEL_OK")
</pallas_src>

<mosaic_0001>
module attributes {stable_mosaic.version = 11 : i64} {
  func.func @_conv_relu_kernel(%arg0: i32, %arg1: memref<1x16x64xf32, #tpu.memory_space<vmem>>, %arg2: memref<3x64x128xf32, #tpu.memory_space<vmem>>, %arg3: memref<1x16x128xf32, #tpu.memory_space<vmem>>) attributes {dimension_semantics = [#tpu.dimension_semantics<parallel>], iteration_bounds = array<i64: 2>, scalar_prefetch = 0 : i64, scratch_operands = 0 : i64, tpu.core_type = #tpu.core_type<tc>, window_params = [{transform_indices = @transform_0, window_bounds = array<i64: 1, 16, 64>}, {pipeline_mode = #tpu.pipeline_mode<synchronous>, transform_indices = @transform_1, window_bounds = array<i64: 3, 64, 128>}, {transform_indices = @transform_2, window_bounds = array<i64: 1, 16, 128>}]} {
    %c0 = arith.constant 0 : index
    %c0_0 = arith.constant 0 : index
    %c0_1 = arith.constant 0 : index
    %0 = vector.load %arg1[%c0, %c0_0, %c0_1] : memref<1x16x64xf32, #tpu.memory_space<vmem>>, vector<1x16x64xf32>
    %1 = vector.shape_cast %0 : vector<1x16x64xf32> to vector<16x64xf32>
    %cst = arith.constant 0.000000e+00 : f32
    %2 = vector.broadcast %cst : f32 to vector<1x16x128xf32>
    %c0_2 = arith.constant 0 : index
    %c0_3 = arith.constant 0 : index
    %c0_4 = arith.constant 0 : index
    %3 = vector.load %arg2[%c0_2, %c0_3, %c0_4] : memref<3x64x128xf32, #tpu.memory_space<vmem>>, vector<1x64x128xf32>
    %4 = vector.shape_cast %3 : vector<1x64x128xf32> to vector<64x128xf32>
    %cst_5 = arith.constant dense<0.000000e+00> : vector<16x128xf32>
    %5 = tpu.matmul %1, %4, %cst_5 {dimension_numbers = #tpu.dot_dimension_numbers<[1], [0], [0], [1], [0, 0, 1, 1], [], []>} : vector<16x64xf32>, vector<64x128xf32>, vector<16x128xf32> -> vector<16x128xf32>
    %6 = vector.shape_cast %5 : vector<16x128xf32> to vector<1x16x128xf32>
    %cst_6 = arith.constant 0.000000e+00 : f32
    %7 = vector.broadcast %cst_6 : f32 to vector<1x1x128xf32>
    %8 = vector.extract_strided_slice %6 {offsets = [0, 0, 0], sizes = [1, 15, 128], strides = [1, 1, 1]} : vector<1x16x128xf32> to vector<1x15x128xf32>
    %9 = tpu.concatenate %7, %8 in 1 : vector<1x1x128xf32>, vector<1x15x128xf32> -> vector<1x16x128xf32>
    %10 = arith.addf %2, %9 : vector<1x16x128xf32>
    %c1 = arith.constant 1 : index
    %c0_7 = arith.constant 0 : index
    %c0_8 = arith.constant 0 : index
    %11 = vector.load %arg2[%c1, %c0_7, %c0_8] : memref<3x64x128xf32, #tpu.memory_space<vmem>>, vector<1x64x128xf32>
    %12 = vector.shape_cast %11 : vector<1x64x128xf32> to vector<64x128xf32>
    %cst_9 = arith.constant dense<0.000000e+00> : vector<16x128xf32>
    %13 = tpu.matmul %1, %12, %cst_9 {dimension_numbers = #tpu.dot_dimension_numbers<[1], [0], [0], [1], [0, 0, 1, 1], [], []>} : vector<16x64xf32>, vector<64x128xf32>, vector<16x128xf32> -> vector<16x128xf32>
    %14 = vector.shape_cast %13 : vector<16x128xf32> to vector<1x16x128xf32>
    %15 = arith.addf %10, %14 : vector<1x16x128xf32>
    %c2 = arith.constant 2 : index
    %c0_10 = arith.constant 0 : index
    %c0_11 = arith.constant 0 : index
    %16 = vector.load %arg2[%c2, %c0_10, %c0_11] : memref<3x64x128xf32, #tpu.memory_space<vmem>>, vector<1x64x128xf32>
    %17 = vector.shape_cast %16 : vector<1x64x128xf32> to vector<64x128xf32>
    %cst_12 = arith.constant dense<0.000000e+00> : vector<16x128xf32>
    %18 = tpu.matmul %1, %17, %cst_12 {dimension_numbers = #tpu.dot_dimension_numbers<[1], [0], [0], [1], [0, 0, 1, 1], [], []>} : vector<16x64xf32>, vector<64x128xf32>, vector<16x128xf32> -> vector<16x128xf32>
    %19 = vector.shape_cast %18 : vector<16x128xf32> to vector<1x16x128xf32>
    %20 = vector.extract_strided_slice %19 {offsets = [0, 1, 0], sizes = [1, 15, 128], strides = [1, 1, 1]} : vector<1x16x128xf32> to vector<1x15x128xf32>
    %cst_13 = arith.constant 0.000000e+00 : f32
    %21 = vector.broadcast %cst_13 : f32 to vector<1x1x128xf32>
    %22 = tpu.concatenate %20, %21 in 1 : vector<1x15x128xf32>, vector<1x1x128xf32> -> vector<1x16x128xf32>
    %23 = arith.addf %15, %22 : vector<1x16x128xf32>
    %cst_14 = arith.constant 0.000000e+00 : f32
    %24 = vector.broadcast %cst_14 : f32 to vector<1x16x128xf32>
    %25 = arith.maximumf %23, %24 : vector<1x16x128xf32>
    %c0_15 = arith.constant 0 : index
    %c0_16 = arith.constant 0 : index
    %c0_17 = arith.constant 0 : index
    %26 = vector.load %arg3[%c0_15, %c0_16, %c0_17] : memref<1x16x128xf32, #tpu.memory_space<vmem>>, vector<1x16x128xf32>
    tpu.vector_store %arg3[%c0_15, %c0_16, %c0_17], %25 {strides = array<i32>} : memref<1x16x128xf32, #tpu.memory_space<vmem>>, vector<1x16x128xf32>,
    return
  }
  func.func @transform_0(%arg0: i32) -> (i32, i32, i32) {
    %c0_i32 = arith.constant 0 : i32
    %c0_i32_0 = arith.constant 0 : i32
    %c0_i32_1 = arith.constant 0 : i32
    return %arg0, %c0_i32, %c0_i32_0 : i32, i32, i32
  }
  func.func @transform_1(%arg0: i32) -> (i32, i32, i32) {
    %c0_i32 = arith.constant 0 : i32
    %c0_i32_0 = arith.constant 0 : i32
    %c0_i32_1 = arith.constant 0 : i32
    %c0_i32_2 = arith.constant 0 : i32
    return %c0_i32, %c0_i32_0, %c0_i32_1 : i32, i32, i32
  }
  func.func @transform_2(%arg0: i32) -> (i32, i32, i32) {
    %c0_i32 = arith.constant 0 : i32
    %c0_i32_0 = arith.constant 0 : i32
    %c0_i32_1 = arith.constant 0 : i32
    return %arg0, %c0_i32, %c0_i32_0 : i32, i32, i32
  }
}

</mosaic_0001>

<llo_original>
// kernel: tpu_custom_call.1
$region0: #{tpu_custom_call.1}
  #allocation0 [shape = 'u32[]', space=smem, size = 0x4, offset = 0x4, fixed_abs, tag = 'smem constant byte address 0x4 - core index']
  #allocation1 [shape = 'u32[144,128]{1,0:T(1,128)}', space=vmem, size = 0x12000, scoped, tag = 'internal scratch']
  %s0 = inlined_call_operand.hbm [shape: f32[2,16,64], index: 0, kind: input, shape index: {}]
  %s1 = inlined_call_operand.hbm [shape: f32[3,64,128], index: 1, kind: input, shape index: {}]
  %s2 = inlined_call_operand.hbm [shape: f32[2,16,128], index: 2, kind: output, shape index: {}]
  %s3 = sld [smem:[#allocation0]]
  $region49: #{tpu_custom_call.1} parent=0
    _
  %s5 = ssub.s32 1, %s3
  %s6 = scalar_select 0, %s5, %s3
  $region1: #{tpu_custom_call.1} parent=0
    #allocation2 [shape = 'u8[16384]{0}', space=vmem, size = 0x4000, scoped, tag = 'input window, operand 0']
    #allocation3 [shape = 's32[2]{0}', space=sflag, size = 0x8, scoped, tag = 'scoped memory for tpu_custom_call.1']
    #allocation4 [shape = 's32[2]{0}', space=sflag, size = 0x8, scoped, tag = 'scoped memory for tpu_custom_call.1']
    #allocation5 [shape = 'u8[98304]{0}', space=vmem, size = 0x18000, scoped, tag = 'input window, operand 1, single buffered']
    #allocation6 [shape = 's32[1]{0}', space=sflag, size = 0x4, scoped, tag = 'scoped memory for tpu_custom_call.1']
    #allocation7 [shape = 'u8[16384]{0}', space=vmem, size = 0x4000, scoped, tag = 'output window, operand 0']
    %7 = vsyncpa [#allocation3], 0
    %s8 = scalar_lea.sflag [#allocation3], 1
    %9 = vsyncpa %s8, 0
    %10 = vsyncpa [#allocation6], 0
    %11 = vsyncpa [#allocation4], 0
    %s12 = scalar_lea.sflag [#allocation4], 1
    %13 = vsyncpa %s12, 0
    loop: start=0, step=1, limit=4
    $region2: #{tpu_custom_call.1} parent=1 // loop_pre_header
      _
    $region3: #{tpu_custom_call.1} parent=1 // loop_header
      %s15 = sphi 0, %s19
      %p16 = scmp.ge.s32.totalorder %s15, 4
      %s25 = sphi 0, %s27
      %s28 = sphi 0, %s25
      %s29 = sphi 0, %s28
      %s45 = sphi 0, %s29
      %s49 = sphi 0, %s49
      %s51 = sphi 0, %s49
      %s52 = sphi 0, %s51
      %s66 = sphi 0, %s52
      %s72 = sphi 0, %s74
      %s75 = sphi 0, %s72
      %s76 = sphi 0, %s75
      %s92 = sphi 0, %s76
    $region4: #{tpu_custom_call.1} parent=1 // loop_header_branch
      %18 = sbr.rel (%p16) target = $region8
    $region5: #{tpu_custom_call.1} parent=1 // loop_body
      %s20 = ssub.s32 %s15, 1
      %s21 = ssub.s32 %s15, 2
      %s22 = sadd.s32 %s15, 1
      %s23 = ssub.s32 %s15, %s22
      %p24 = scmp.eq.s32.totalorder %s23, 0
      %s26 = sadd.s32 %s25, 1
      %s27 = scalar_select %p24, %s25, %s26
      %p30 = pneg %p24
      %p31 = scmp.eq.s32.totalorder %s15, 1
      %p32 = por %p30, %p31
      %p33 = scmp.ne.s32.totalorder %s25, %s28
      %p34 = scmp.eq.s32.totalorder %s15, 0
      %p35 = por %p33, %p34
      %p36 = scmp.ne.s32.totalorder %s25, %s28
      %p37 = scmp.eq.s32.totalorder %s20, 1
      %p38 = por %p36, %p37
      %p39 = scmp.ne.s32.totalorder %s28, %s29
      %p40 = scmp.eq.s32.totalorder %s20, 0
      %p41 = por %p39, %p40
      %p42 = scmp.ne.s32.totalorder %s28, %s29
      %p43 = scmp.eq.s32.totalorder %s21, 1
      %p44 = por %p42, %p43
      %p46 = scmp.ne.s32.totalorder %s29, %s45
      %p47 = scmp.eq.s32.totalorder %s21, 0
      %p48 = por %p46, %p47
      %s50 = sadd.s32 %s49, 1
      %p53 = scmp.eq.s32.totalorder %s15, 1
      %p54 = scmp.ne.s32.totalorder %s49, %s51
      %p55 = scmp.eq.s32.totalorder %s15, 0
      %p56 = por %p54, %p55
      %p57 = scmp.ne.s32.totalorder %s49, %s51
      %p58 = scmp.eq.s32.totalorder %s20, 1
      %p59 = por %p57, %p58
      %p60 = scmp.ne.s32.totalorder %s51, %s52
      %p61 = scmp.eq.s32.totalorder %s20, 0
      %p62 = por %p60, %p61
      %p63 = scmp.ne.s32.totalorder %s51, %s52
      %p64 = scmp.eq.s32.totalorder %s21, 1
      %p65 = por %p63, %p64
      %p67 = scmp.ne.s32.totalorder %s52, %s66
      %p68 = scmp.eq.s32.totalorder %s21, 0
      %p69 = por %p67, %p68
      %s70 = ssub.s32 %s15, %s22
      %p71 = scmp.eq.s32.totalorder %s70, 0
      %s73 = sadd.s32 %s72, 1
      %s74 = scalar_select %p71, %s72, %s73
      %p77 = pneg %p71
      %p78 = scmp.eq.s32.totalorder %s15, 1
      %p79 = por %p77, %p78
      %p80 = scmp.ne.s32.totalorder %s72, %s75
      %p81 = scmp.eq.s32.totalorder %s15, 0
      %p82 = por %p80, %p81
      %p83 = scmp.ne.s32.totalorder %s72, %s75
      %p84 = scmp.eq.s32.totalorder %s20, 1
      %p85 = por %p83, %p84
      %p86 = scmp.ne.s32.totalorder %s75, %s76
      %p87 = scmp.eq.s32.totalorder %s20, 0
      %p88 = por %p86, %p87
      %p89 = scmp.ne.s32.totalorder %s75, %s76
      %p90 = scmp.eq.s32.totalorder %s21, 1
      %p91 = por %p89, %p90
      %p93 = scmp.ne.s32.totalorder %s76, %s92
      %p94 = scmp.eq.s32.totalorder %s21, 0
      %p95 = por %p93, %p94
      %p96 = scmp.le.s32.totalorder 1, %s15
      %p97 = scmp.lt.s32.totalorder %s15, 3
      %p98 = pnand %p96, %p97
      %p99 = pneg %p98
      // Predicated region
      $region9: #{tpu_custom_call.1} parent=5 // pred_check
        _
      $region10: #{tpu_custom_call.1} parent=5 // pred_check_branch
        %101 = sbr.rel (%p98) target = $region12
      $region11: #{tpu_custom_call.1} parent=5 // pred_region
        %s102 = ssub.s32 %s15, 1
        // Predicated region
        $region13: #{tpu_custom_call.1} parent=11 // pred_check
          %p103 = pneg %p62
        $region14: #{tpu_custom_call.1} parent=11 // pred_check_branch
          %105 = sbr.rel (%p103) target = $region16
        $region15: #{tpu_custom_call.1} parent=11 // pred_region
          %s107 = ssub.s32 3072, 3072
          %108 = vsyncadd [#allocation6], %s107
          %s109 = sshll.u32 [#allocation5], 4
          %s110 = int_to_ptr.vmem [resolvable:$true] %s109
          %115 = dma.hbm_to_vmem [thread:$0]  %s1, 3072, %s110, [#allocation6], 128, 128, 8
        $region16: #{tpu_custom_call.1} parent=11 // pred_fallthru
          _
      $region12: #{tpu_custom_call.1} parent=5 // pred_fallthru
        _
      %p116 = scmp.lt.s32.totalorder %s15, 2
      // Predicated region
      $region17: #{tpu_custom_call.1} parent=5 // pred_check
        %p117 = pneg %p116
      $region18: #{tpu_custom_call.1} parent=5 // pred_check_branch
        %119 = sbr.rel (%p117) target = $region20
      $region19: #{tpu_custom_call.1} parent=5 // pred_region
        // Predicated region
        $region21: #{tpu_custom_call.1} parent=19 // pred_check
          %p120 = pneg %p35
        $region22: #{tpu_custom_call.1} parent=19 // pred_check_branch
          %122 = sbr.rel (%p120) target = $region24
        $region23: #{tpu_custom_call.1} parent=19 // pred_region
          %s123 = sand.u32 %s25, 1
          %s124 = scalar_lea.sflag [#allocation3], %s123
          %s125 = sand.u32 %s25, 1
          %s126 = smul.addr %s125, 16
          %s127 = scalar_lea.vmem [#allocation2], %s126
          %s129 = ssub.s32 256, 256
          %130 = vsyncadd %s124, %s129
          %s131 = smul.addr %s15, 2
          %s132 = smul.addr %s131, 128
          %s133 = scalar_lea.hbm %s0, %s132
          %s134 = sshll.u32 %s127, 4
          %s135 = int_to_ptr.vmem [resolvable:$true] %s134
          %140 = dma.hbm_to_vmem [thread:$0]  %s133, 256, %s135, %s124, 128, 128, 8
        $region24: #{tpu_custom_call.1} parent=19 // pred_fallthru
          _
      $region20: #{tpu_custom_call.1} parent=5 // pred_fallthru
        _
      %p141 = scmp.le.s32.totalorder 1, %s15
      %p142 = scmp.lt.s32.totalorder %s15, 3
      %p143 = pnand %p141, %p142
      %p144 = pneg %p143
      // Predicated region
      $region25: #{tpu_custom_call.1} parent=5 // pred_check
        _
      $region26: #{tpu_custom_call.1} parent=5 // pred_check_branch
        %146 = sbr.rel (%p143) target = $region28
      $region27: #{tpu_custom_call.1} parent=5 // pred_region
        %s147 = ssub.s32 %s15, 1
        %s148 = sand.u32 %s28, 1
        %s149 = scalar_lea.sflag [#allocation3], %s148
        %s150 = sand.u32 %s28, 1
        %s151 = smul.addr %s150, 16
        %s152 = scalar_lea.vmem [#allocation2], %s151
        // Predicated region
        $region29: #{tpu_custom_call.1} parent=27 // pred_check
          %p153 = pneg %p41
        $region30: #{tpu_custom_call.1} parent=27 // pred_check_branch
          %155 = sbr.rel (%p153) target = $region32
        $region31: #{tpu_custom_call.1} parent=27 // pred_region
          %156 = dma.done %s149, 256
        $region32: #{tpu_custom_call.1} parent=27 // pred_fallthru
          _
        // Predicated region
        $region33: #{tpu_custom_call.1} parent=27 // pred_check
          %p157 = pneg %p62
        $region34: #{tpu_custom_call.1} parent=27 // pred_check_branch
          %159 = sbr.rel (%p157) target = $region36
        $region35: #{tpu_custom_call.1} parent=27 // pred_region
          %160 = dma.done [#allocation6], 3072
        $region36: #{tpu_custom_call.1} parent=27 // pred_fallthru
          _
        %s161 = sand.u32 %s28, 1
        %s162 = scalar_lea.sflag [#allocation3], %s161
        %s163 = sand.u32 %s28, 1
        %s164 = smul.addr %s163, 16
        %s165 = scalar_lea.vmem [#allocation2], %s164
        %p166 = pneg %p41
        %p167 = pneg %p38
        %p168 = pneg %p62
        %p169 = pneg %p59
        %p170 = pneg %p88
        %p171 = pneg %p85
        %s172 = sand.u32 %s75, 1
        %s173 = scalar_lea.sflag [#allocation4], %s172
        %s174 = sand.u32 %s75, 1
        %s175 = smul.addr %s174, 16
        %s176 = scalar_lea.vmem [#allocation7], %s175
        %v177 = vld [vmem:[%s152] sm:$0xff]
        %v178 = vld [vmem:[%s152 + $0x8] sm:$0xff]
        %v179 = vld [vmem:[#allocation5] sm:$0xff]
        %v180 = vld [vmem:[#allocation5 + $0x8] sm:$0xff]
        %v181 = vld [vmem:[#allocation5 + $0x10] sm:$0xff]
        %v182 = vld [vmem:[#allocation5 + $0x18] sm:$0xff]
        %v183 = vld [vmem:[#allocation5 + $0x20] sm:$0xff]
        %v184 = vld [vmem:[#allocation5 + $0x28] sm:$0xff]
        %v185 = vld [vmem:[#allocation5 + $0x30] sm:$0xff]
        %v186 = vld [vmem:[#allocation5 + $0x38] sm:$0xff]
        %vm187 = vcmask 523264
        %v189 = vsel %vm187, %v177, 0
        %v192 = vsel %vm187, %v178, 0
        %194 = vmatprep.subr.mxu0 0.0
        %195 = vmatpush1.msra.mxu0 %v179
        %196 = vmatprep.subr.mxu0 0.0
        %197 = vmatpush1.msra.mxu0 %v180
        %198 = vmatprep.subr.mxu0 0.0
        %199 = vmatpush1.msra.mxu0 %v181
        %200 = vmatprep.subr.mxu0 0.0
        %201 = vmatpush1.msra.mxu0 %v182
        %202 = vmatprep.subr.mxu0 0.0
        %203 = vmatpush1.msra.mxu0 %v183
        %204 = vmatprep.subr.mxu0 0.0
        %205 = vmatpush1.msra.mxu0 %v184
        %206 = vmatprep.subr.mxu0 0.0
        %207 = vmatpush1.msra.mxu0 %v185
        %208 = vmatprep.subr.mxu0 0.0
        %209 = vmatpush1.msra.mxu0 %v186
        %210 = vmatprep.subr.mxu0 0.0
        %211 = vmatpush1.msra.mxu0 0.0
        %212 = vmatprep.subr.mxu0 0.0
        %213 = vmatpush1.msra.mxu0 0.0
        %214 = vmatprep.subr.mxu0 0.0
        %215 = vmatpush1.msra.mxu0 0.0
        %216 = vmatprep.subr.mxu0 0.0
        %217 = vmatpush1.msra.mxu0 0.0
        %218 = vmatprep.subr.mxu0 0.0
        %219 = vmatpush1.msra.mxu0 0.0
        %220 = vmatprep.subr.mxu0 0.0
        %221 = vmatpush1.msra.mxu0 0.0
        %222 = vmatprep.subr.mxu0 0.0
        %223 = vmatpush1.msra.mxu0 0.0
        %224 = vmatprep.subr.mxu0 0.0
        %225 = vmatpush1.msra.mxu0 0.0
        %226 = vmatprep.subr.mxu0 0.0
        %227 = vmatpush1.msra.mxu0 0.0
        %228 = vmatprep.subr.mxu0 0.0
        %229 = vmatpush1.msra.mxu0 0.0
        %230 = vmatprep.subr.mxu0 0.0
        %231 = vmatpush1.msra.mxu0 0.0
        %232 = vmatprep.subr.mxu0 0.0
        %233 = vmatpush1.msra.mxu0 0.0
        %234 = vmatprep.subr.mxu0 0.0
        %235 = vmatpush1.msra.mxu0 0.0
        %236 = vmatprep.subr.mxu0 0.0
        %237 = vmatpush1.msra.mxu0 0.0
        %238 = vmatprep.subr.mxu0 0.0
        %239 = vmatpush1.msra.mxu0 0.0
        %240 = vmatprep.subr.mxu0 0.0
        %241 = vmatpush1.msra.mxu0 0.0
        %242 = vmatprep.subr.mxu0 0.0
        %243 = vmatpush1.msra.mxu0 0.0
        %244 = vmatprep.subr.mxu0 0.0
        %245 = vmatpush1.msra.mxu0 0.0
        %246 = vmatprep.subr.mxu0 0.0
        %247 = vmatpush1.msra.mxu0 0.0
        %248 = vmatprep.subr.mxu0 0.0
        %249 = vmatpush1.msra.mxu0 0.0
        %250 = vmatprep.subr.mxu0 0.0
        %251 = vmatpush1.msra.mxu0 0.0
        %252 = vmatprep.subr.mxu0 0.0
        %253 = vmatpush1.msra.mxu0 0.0
        %254 = vmatprep.subr.mxu0 0.0
        %255 = vmatpush1.msra.mxu0 0.0
        %256 = vmatprep.subr.mxu0 0.0
        %257 = vmatpush1.msra.mxu0 0.0
        %258 = vmatprep.mubr.f32.mxu0 0.0
        %259 = vmatmul.mubr.f32.gmra.mrb[0].mxu0 %v189
        %v260 = vpop.f32.mrb[0].mxu0
        %v261 = vadd.f32 0.0, %v260
        %v262 = vpop.f32.mrb[0].mxu0
        %263 = vmatprep.mubr.f32.mxu0 0.0
        %264 = vmatmul.mubr.f32.gmra.mrb[0].mxu0 %v192
        %v265 = vpop.f32.mrb[0].mxu0
        %v266 = vadd.f32 0.0, %v265
        %v267 = vpop.f32.mrb[0].mxu0
        %268 = vdwg.mxu0
        %vm271 = vcmask 1040384
        %v272 = vrot.slane %v261, 7
        %v273 = vrot.slane %v266, 7
        %v274 = vsel %vm271, %v272, %v273
        %v277 = vsel %vm271, 0.0, %v272
        %v278 = vadd.f32 %v277, 0.0
        %v279 = vadd.f32 %v274, 0.0
        %s280 = scalar_lea.vmem [#allocation5], 64
        %v281 = vld [vmem:[%s280] sm:$0xff]
        %v282 = vld [vmem:[%s280 + $0x8] sm:$0xff]
        %v283 = vld [vmem:[%s280 + $0x10] sm:$0xff]
        %v284 = vld [vmem:[%s280 + $0x18] sm:$0xff]
        %v285 = vld [vmem:[%s280 + $0x20] sm:$0xff]
        %v286 = vld [vmem:[%s280 + $0x28] sm:$0xff]
        %v287 = vld [vmem:[%s280 + $0x30] sm:$0xff]
        %v288 = vld [vmem:[%s280 + $0x38] sm:$0xff]
        %289 = vmatprep.subr.mxu0 0.0
        %290 = vmatpush1.msra.mxu0 %v281
        %291 = vmatprep.subr.mxu0 0.0
        %292 = vmatpush1.msra.mxu0 %v282
        %293 = vmatprep.subr.mxu0 0.0
        %294 = vmatpush1.msra.mxu0 %v283
        %295 = vmatprep.subr.mxu0 0.0
        %296 = vmatpush1.msra.mxu0 %v284
        %297 = vmatprep.subr.mxu0 0.0
        %298 = vmatpush1.msra.mxu0 %v285
        %299 = vmatprep.subr.mxu0 0.0
        %300 = vmatpush1.msra.mxu0 %v286
        %301 = vmatprep.subr.mxu0 0.0
        %302 = vmatpush1.msra.mxu0 %v287
        %303 = vmatprep.subr.mxu0 0.0
        %304 = vmatpush1.msra.mxu0 %v288
        %305 = vmatprep.subr.mxu0 0.0
        %306 = vmatpush1.msra.mxu0 0.0
        %307 = vmatprep.subr.mxu0 0.0
        %308 = vmatpush1.msra.mxu0 0.0
        %309 = vmatprep.subr.mxu0 0.0
        %310 = vmatpush1.msra.mxu0 0.0
        %311 = vmatprep.subr.mxu0 0.0
        %312 = vmatpush1.msra.mxu0 0.0
        %313 = vmatprep.subr.mxu0 0.0
        %314 = vmatpush1.msra.mxu0 0.0
        %315 = vmatprep.subr.mxu0 0.0
        %316 = vmatpush1.msra.mxu0 0.0
        %317 = vmatprep.subr.mxu0 0.0
        %318 = vmatpush1.msra.mxu0 0.0
        %319 = vmatprep.subr.mxu0 0.0
        %320 = vmatpush1.msra.mxu0 0.0
        %321 = vmatprep.subr.mxu0 0.0
        %322 = vmatpush1.msra.mxu0 0.0
        %323 = vmatprep.subr.mxu0 0.0
        %324 = vmatpush1.msra.mxu0 0.0
        %325 = vmatprep.subr.mxu0 0.0
        %326 = vmatpush1.msra.mxu0 0.0
        %327 = vmatprep.subr.mxu0 0.0
        %328 = vmatpush1.msra.mxu0 0.0
        %329 = vmatprep.subr.mxu0 0.0
        %330 = vmatpush1.msra.mxu0 0.0
        %331 = vmatprep.subr.mxu0 0.0
        %332 = vmatpush1.msra.mxu0 0.0
        %333 = vmatprep.subr.mxu0 0.0
        %334 = vmatpush1.msra.mxu0 0.0
        %335 = vmatprep.subr.mxu0 0.0
        %336 = vmatpush1.msra.mxu0 0.0
        %337 = vmatprep.subr.mxu0 0.0
        %338 = vmatpush1.msra.mxu0 0.0
        %339 = vmatprep.subr.mxu0 0.0
        %340 = vmatpush1.msra.mxu0 0.0
        %341 = vmatprep.subr.mxu0 0.0
        %342 = vmatpush1.msra.mxu0 0.0
        %343 = vmatprep.subr.mxu0 0.0
        %344 = vmatpush1.msra.mxu0 0.0
        %345 = vmatprep.subr.mxu0 0.0
        %346 = vmatpush1.msra.mxu0 0.0
        %347 = vmatprep.subr.mxu0 0.0
        %348 = vmatpush1.msra.mxu0 0.0
        %349 = vmatprep.subr.mxu0 0.0
        %350 = vmatpush1.msra.mxu0 0.0
        %351 = vmatprep.subr.mxu0 0.0
        %352 = vmatpush1.msra.mxu0 0.0
        %353 = vmatprep.mubr.f32.mxu0 0.0
        %354 = vmatmul.mubr.f32.gmra.mrb[0].mxu0 %v189
        %v355 = vpop.f32.mrb[0].mxu0
        %v356 = vadd.f32 0.0, %v355
        %v357 = vpop.f32.mrb[0].mxu0
        %358 = vmatprep.mubr.f32.mxu0 0.0
        %359 = vmatmul.mubr.f32.gmra.mrb[0].mxu0 %v192
        %v360 = vpop.f32.mrb[0].mxu0
        %v361 = vadd.f32 0.0, %v360
        %v362 = vpop.f32.mrb[0].mxu0
        %363 = vdwg.mxu0
        %v364 = vadd.f32 %v278, %v356
        %v365 = vadd.f32 %v279, %v361
        %s366 = scalar_lea.vmem [#allocation5], 128
        %v367 = vld [vmem:[%s366] sm:$0xff]
        %v368 = vld [vmem:[%s366 + $0x8] sm:$0xff]
        %v369 = vld [vmem:[%s366 + $0x10] sm:$0xff]
        %v370 = vld [vmem:[%s366 + $0x18] sm:$0xff]
        %v371 = vld [vmem:[%s366 + $0x20] sm:$0xff]
        %v372 = vld [vmem:[%s366 + $0x28] sm:$0xff]
        %v373 = vld [vmem:[%s366 + $0x30] sm:$0xff]
        %v374 = vld [vmem:[%s366 + $0x38] sm:$0xff]
        %375 = vmatprep.subr.mxu0 0.0
        %376 = vmatpush1.msra.mxu0 %v367
        %377 = vmatprep.subr.mxu0 0.0
        %378 = vmatpush1.msra.mxu0 %v368
        %379 = vmatprep.subr.mxu0 0.0
        %380 = vmatpush1.msra.mxu0 %v369
        %381 = vmatprep.subr.mxu0 0.0
        %382 = vmatpush1.msra.mxu0 %v370
        %383 = vmatprep.subr.mxu0 0.0
        %384 = vmatpush1.msra.mxu0 %v371
        %385 = vmatprep.subr.mxu0 0.0
        %386 = vmatpush1.msra.mxu0 %v372
        %387 = vmatprep.subr.mxu0 0.0
        %388 = vmatpush1.msra.mxu0 %v373
        %389 = vmatprep.subr.mxu0 0.0
        %390 = vmatpush1.msra.mxu0 %v374
        %391 = vmatprep.subr.mxu0 0.0
        %392 = vmatpush1.msra.mxu0 0.0
        %393 = vmatprep.subr.mxu0 0.0
        %394 = vmatpush1.msra.mxu0 0.0
        %395 = vmatprep.subr.mxu0 0.0
        %396 = vmatpush1.msra.mxu0 0.0
        %397 = vmatprep.subr.mxu0 0.0
        %398 = vmatpush1.msra.mxu0 0.0
        %399 = vmatprep.subr.mxu0 0.0
        %400 = vmatpush1.msra.mxu0 0.0
        %401 = vmatprep.subr.mxu0 0.0
        %402 = vmatpush1.msra.mxu0 0.0
        %403 = vmatprep.subr.mxu0 0.0
        %404 = vmatpush1.msra.mxu0 0.0
        %405 = vmatprep.subr.mxu0 0.0
        %406 = vmatpush1.msra.mxu0 0.0
        %407 = vmatprep.subr.mxu0 0.0
        %408 = vmatpush1.msra.mxu0 0.0
        %409 = vmatprep.subr.mxu0 0.0
        %410 = vmatpush1.msra.mxu0 0.0
        %411 = vmatprep.subr.mxu0 0.0
        %412 = vmatpush1.msra.mxu0 0.0
        %413 = vmatprep.subr.mxu0 0.0
        %414 = vmatpush1.msra.mxu0 0.0
        %415 = vmatprep.subr.mxu0 0.0
        %416 = vmatpush1.msra.mxu0 0.0
        %417 = vmatprep.subr.mxu0 0.0
        %418 = vmatpush1.msra.mxu0 0.0
        %419 = vmatprep.subr.mxu0 0.0
        %420 = vmatpush1.msra.mxu0 0.0
        %421 = vmatprep.subr.mxu0 0.0
        %422 = vmatpush1.msra.mxu0 0.0
        %423 = vmatprep.subr.mxu0 0.0
        %424 = vmatpush1.msra.mxu0 0.0
        %425 = vmatprep.subr.mxu0 0.0
        %426 = vmatpush1.msra.mxu0 0.0
        %427 = vmatprep.subr.mxu0 0.0
        %428 = vmatpush1.msra.mxu0 0.0
        %429 = vmatprep.subr.mxu0 0.0
        %430 = vmatpush1.msra.mxu0 0.0
        %431 = vmatprep.subr.mxu0 0.0
        %432 = vmatpush1.msra.mxu0 0.0
        %433 = vmatprep.subr.mxu0 0.0
        %434 = vmatpush1.msra.mxu0 0.0
        %435 = vmatprep.subr.mxu0 0.0
        %436 = vmatpush1.msra.mxu0 0.0
        %437 = vmatprep.subr.mxu0 0.0
        %438 = vmatpush1.msra.mxu0 0.0
        %439 = vmatprep.mubr.f32.mxu0 0.0
        %440 = vmatmul.mubr.f32.gmra.mrb[0].mxu0 %v189
        %v441 = vpop.f32.mrb[0].mxu0
        %v442 = vadd.f32 0.0, %v441
        %v443 = vpop.f32.mrb[0].mxu0
        %444 = vmatprep.mubr.f32.mxu0 0.0
        %445 = vmatmul.mubr.f32.gmra.mrb[0].mxu0 %v192
        %v446 = vpop.f32.mrb[0].mxu0
        %v447 = vadd.f32 0.0, %v446
        %v448 = vpop.f32.mrb[0].mxu0
        %449 = vdwg.mxu0
        %vm452 = vcmask 1046528
        %v453 = vrot.slane %v442, 1
        %v454 = vrot.slane %v447, 1
        %v455 = vsel %vm452, %v453, %v454
        %v458 = vsel %vm452, %v454, 0.0
        %v459 = vadd.f32 %v364, %v455
        %v460 = vadd.f32 %v365, %v458
        %v461 = vmax.f32 %v459, 0.0
        %v462 = vmax.f32 %v460, 0.0
        %463 = vst [vmem:[%s176] sm:$0xff] %v461
        %464 = vst [vmem:[%s176 + $0x8] sm:$0xff] %v462
        %s465 = sand.u32 %s75, 1
        %s466 = scalar_lea.sflag [#allocation4], %s465
        %s467 = sand.u32 %s75, 1
        %s468 = smul.addr %s467, 16
        %s469 = scalar_lea.vmem [#allocation7], %s468
        // Predicated region
        $region37: #{tpu_custom_call.1} parent=27 // pred_check
          %p470 = pneg %p85
        $region38: #{tpu_custom_call.1} parent=27 // pred_check_branch
          %472 = sbr.rel (%p470) target = $region40
        $region39: #{tpu_custom_call.1} parent=27 // pred_region
          %s474 = ssub.s32 256, 256
          %475 = vsyncadd %s466, %s474
          %s476 = smul.addr %s20, 2
          %s477 = smul.addr %s476, 128
          %s478 = scalar_lea.hbm %s2, %s477
          %s479 = sshll.u32 %s469, 4
          %s480 = int_to_ptr.vmem [resolvable:$true] %s479
          %485 = dma.vmem_to_hbm [thread:$0]  %s480, 256, %s478, %s466, 128, 128, 8
        $region40: #{tpu_custom_call.1} parent=27 // pred_fallthru
          _
      $region28: #{tpu_custom_call.1} parent=5 // pred_fallthru
        _
      %p486 = scmp.le.s32.totalorder 2, %s15
      // Predicated region
      $region41: #{tpu_custom_call.1} parent=5 // pred_check
        %p487 = pneg %p486
      $region42: #{tpu_custom_call.1} parent=5 // pred_check_branch
        %489 = sbr.rel (%p487) target = $region44
      $region43: #{tpu_custom_call.1} parent=5 // pred_region
        %s490 = ssub.s32 %s15, 2
        // Predicated region
        $region45: #{tpu_custom_call.1} parent=43 // pred_check
          %p491 = pneg %p91
        $region46: #{tpu_custom_call.1} parent=43 // pred_check_branch
          %493 = sbr.rel (%p491) target = $region48
        $region47: #{tpu_custom_call.1} parent=43 // pred_region
          %s494 = sand.u32 %s76, 1
          %s495 = scalar_lea.sflag [#allocation4], %s494
          %s496 = sand.u32 %s76, 1
          %s497 = smul.addr %s496, 16
          %s498 = scalar_lea.vmem [#allocation7], %s497
          %499 = dma.done %s495, 256
        $region48: #{tpu_custom_call.1} parent=43 // pred_fallthru
          _
      $region44: #{tpu_custom_call.1} parent=5 // pred_fallthru
        _
    $region6: #{tpu_custom_call.1} parent=1 // loop_footer
      %s19 = sadd.s32 1, %s15
    $region7: #{tpu_custom_call.1} parent=1 // loop_footer_branch
      %14 = sbr.rel target = $region3
    $region8: #{tpu_custom_call.1} parent=1 // loop_exit
      _
    %500 = vsyncpa [#allocation3], 1
    %s501 = scalar_lea.sflag [#allocation3], 1
    %502 = vsyncpa %s501, 1
    %503 = vsyncpa [#allocation6], 1
    %504 = vsyncpa [#allocation4], 1
    %s505 = scalar_lea.sflag [#allocation4], 1
    %506 = vsyncpa %s505, 1

</llo_original>
